<compile_context>
chip_gen: v5e
topology: v5e:2x2
jax: 0.10.0
libtpu: 0.0.40
codegen_flags: <defaults>
</compile_context>

<pallas_src>
import functools

import jax
import jax.numpy as jnp
import numpy as np
from jax import lax
from jax.experimental import pallas as pl
from jax.experimental.pallas import tpu as pltpu


_ONEHOT_VOCAB_LIMIT = 512   # above this, gather rows instead of one-hot matmul
_NEG_MASK = -1e30           # additive mask for invalid window positions


# ----------------------------------------------------------------------------
# Fused kernel: embedding + conv(+bias+ReLU+max-pool) for every filter + FC
# ----------------------------------------------------------------------------
def _trec_cnn_fused_kernel(first_ref, *rest, sent_len, max_f, block_w,
                           onehot_embed):
    # Refs (onehot_embed=True):
    #   first_ref : (tb, Lp)   int32  token ids
    #   emb_ref   : (V+2, D)   f32    embedding table
    # Refs (onehot_embed=False):
    #   first_ref : (tb*Lp, D) f32    pre-gathered word embeddings
    # Common:
    #   wstk_ref  : (D, max_f*block_w) f32  conv weights, one 128-lane-aligned
    #               block per tap, channel slot = running filter offset
    #   cbias_ref : (1, block_w)       f32  conv biases at their channel slots
    #   pmask_ref : (Lp, block_w)      f32  0 for valid window positions, -1e30
    #   fcw_ref   : (block_w, CPAD)    f32  FC weight, zero rows off the slots
    #   fcb_ref   : (1, CPAD)          f32
    #   o_ref     : (tb, CPAD)         f32  logits (lane-dense, padded classes)
    #   acc_ref   : (tb, Lp, block_w)  f32  scratch window-score accumulator
    if onehot_embed:
        (emb_ref, wstk_ref, cbias_ref, pmask_ref, fcw_ref, fcb_ref,
         o_ref, acc_ref) = rest
        ids = first_ref[...]                                   # (tb, Lp)
        tb = ids.shape[0]
        vp = emb_ref.shape[0]
        # One-hot embedding lookup on the MXU (exact selection; tiny vocab only)
        iota_v = lax.broadcasted_iota(jnp.int32, (tb, sent_len, vp), 2)
        onehot = (ids[:, :, None] == iota_v).astype(jnp.float32)
        x = jnp.dot(onehot.reshape(tb * sent_len, vp), emb_ref[...],
                    preferred_element_type=jnp.float32)        # (tb*Lp, D)
    else:
        (wstk_ref, cbias_ref, pmask_ref, fcw_ref, fcb_ref,
         o_ref, acc_ref) = rest
        x = first_ref[...]                                     # (tb*Lp, D)
        tb = x.shape[0] // sent_len

    # One projection per (tap, channel-slot): a single MXU matmul.
    p = jnp.dot(x, wstk_ref[...], preferred_element_type=jnp.float32)
    p = p.reshape(tb, sent_len, max_f * block_w)               # (tb, Lp, taps)

    # Sliding window = shift-and-add over taps.  Every lane slice is a full
    # 128-lane (block_w) block, so only sublane offsets shift.
    acc_ref[...] = p[:, :, 0:block_w]                          # tap 0
    for j in range(1, max_f):
        acc_ref[:, 0:sent_len - j, :] = (
            acc_ref[:, 0:sent_len - j, :]
            + p[:, j:sent_len, j * block_w:(j + 1) * block_w])

    # Mask invalid window positions per filter, max-pool over positions, then
    # bias + ReLU hoisted out of the window max (both monotone).
    pooled = jnp.max(acc_ref[...] + pmask_ref[...], axis=1)    # (tb, block_w)
    feat = jnp.maximum(pooled + cbias_ref[...], 0.0)

    # TODO(synk): F.dropout in training mode not implemented (identity / eval).
    o_ref[...] = (jnp.dot(feat, fcw_ref[...],
                          preferred_element_type=jnp.float32)
                  + fcb_ref[...]).astype(o_ref.dtype)


def _pick_batch_tile(batch, sent_len):
    """Batch tile with tb*L ~<= 512 rows, tb a multiple of 8 (or whole batch),
    dividing batch; prefers an even block count (v7x has two TensorCores)."""
    cap = max(8, 512 // max(sent_len, 1))
    cands = [tb for tb in range(8, min(batch, cap) + 1, 8) if batch % tb == 0]
    if not cands:
        return batch                       # tiny batch: one whole-batch block
    even = [tb for tb in cands if (batch // tb) % 2 == 0]
    return max(even) if even else max(cands)


def trec_cnn_forward(ids, emb, wstack, cbias, posmask, fcw, fcb, *,
                     max_f, block_w):
    B, Lp = ids.shape
    Vp, D = emb.shape
    CPAD = fcw.shape[1]

    tb = _pick_batch_tile(B, Lp)
    n_blk = B // tb
    use_onehot = Vp <= _ONEHOT_VOCAB_LIMIT

    operands, in_specs = [], []
    if use_onehot:
        operands += [ids, emb]
        in_specs += [pl.BlockSpec((tb, Lp), lambda i: (i, 0)),
                     pl.BlockSpec(emb.shape, lambda i: (0, 0))]
    else:
        # Realistic vocab: gather embedding rows instead of a (B*L, V) one-hot.
        # TODO(synk): fold this gather into the kernel (scalar-prefetched ids +
        # per-row DMA) so embedding rows do not round-trip through HBM.
        x = jnp.take(emb, ids.reshape(-1), axis=0)
        operands += [x]
        in_specs += [pl.BlockSpec((tb * Lp, D), lambda i: (i, 0))]

    weightlike = [wstack, cbias, posmask, fcw, fcb]
    operands += weightlike
    # NOTE: for very large tables, pipeline_mode=pl.Buffered(1) on these
    # constant-index operands would halve their double-buffered VMEM footprint.
    in_specs += [pl.BlockSpec(w.shape, lambda i: (0, 0)) for w in weightlike]

    kern = functools.partial(_trec_cnn_fused_kernel, sent_len=Lp, max_f=max_f,
                             block_w=block_w, onehot_embed=use_onehot)

    # Scoped-VMEM sizing: double-buffered inputs + main f32 intermediates.
    def nbytes(a):
        return int(a.size) * a.dtype.itemsize

    weight_bytes = sum(nbytes(w) for w in weightlike)
    weight_bytes += nbytes(emb) if use_onehot else 0
    rows = tb * Lp
    inter_bytes = 4 * rows * ((Vp if use_onehot else 0) + D
                              + 2 * max_f * block_w + block_w)
    vmem_limit = int(min(max(2 * (2 * weight_bytes + inter_bytes), 32 * 2**20),
                         64 * 2**20))

    flops = (2 * B * Lp * ((Vp * D if use_onehot else 0) + D * max_f * block_w)
             + 2 * B * block_w * CPAD)
    bytes_accessed = int(nbytes(ids)
                         + (nbytes(emb) if use_onehot else 4 * B * Lp * D)
                         + weight_bytes + 4 * B * CPAD)

    return pl.pallas_call(
        kern,
        out_shape=jax.ShapeDtypeStruct((B, CPAD), jnp.float32),
        grid=(n_blk,),
        in_specs=in_specs,
        out_specs=pl.BlockSpec((tb, CPAD), lambda i: (i, 0)),
        scratch_shapes=[pltpu.VMEM((tb, Lp, block_w), jnp.float32)],
        compiler_params=pltpu.CompilerParams(
            dimension_semantics=("parallel",),
            vmem_limit_bytes=vmem_limit),
        cost_estimate=pl.CostEstimate(flops=flops, transcendentals=0,
                                      bytes_accessed=bytes_accessed),
    )(*operands)


# ----------------------------------------------------------------------------
# Model wrapper ("rand" MODEL variant: single channel, trainable embedding)
# ----------------------------------------------------------------------------
class TrecCNNPallas:

    def __init__(self, key, *, max_sent_len, word_dim, vocab_size, class_size,
                 filters, filter_num):
        assert len(filters) == len(filter_num)
        assert max(filters) <= max_sent_len
        self.L = max_sent_len
        self.Lp = ((max_sent_len + 7) // 8) * 8   # free (tb,L)->(tb*L) merge
        self.D = word_dim
        self.V = vocab_size
        self.C = class_size
        self.filters = list(filters)
        self.filter_num = list(filter_num)

        n_keys = 2 + 2 * len(filters) + 2
        keys = jax.random.split(key, n_keys)

        # nn.Embedding(VOCAB_SIZE + 2, WORD_DIM, padding_idx=VOCAB_SIZE + 1)
        self.emb = (jax.random.normal(keys[0], (vocab_size + 2, word_dim),
                                      dtype=jnp.float32) * 0.1)
        self.emb = self.emb.at[vocab_size + 1].set(0.0)  # padding row -> zeros
        # TODO(synk): 'multichannel' MODEL variant (second frozen embedding,
        # IN_CHANNEL=2) not implemented; single-channel semantics only.

        # Conv1d weights, stored transposed as (f*D, F_i)  (torch: (F_i,1,f*D))
        self.conv_w, self.conv_b = [], []
        for i, (f, fn) in enumerate(zip(filters, filter_num)):
            fan_in = f * word_dim
            bound = 1.0 / (fan_in ** 0.5)
            w = jax.random.uniform(keys[1 + 2 * i], (fan_in, fn),
                                   minval=-bound, maxval=bound,
                                   dtype=jnp.float32)
            b = jax.random.uniform(keys[2 + 2 * i], (1, fn),
                                   minval=-bound, maxval=bound,
                                   dtype=jnp.float32)
            self.conv_w.append(w)
            self.conv_b.append(b)

        # fc: Linear(sum(FILTER_NUM), CLASS_SIZE), weight stored transposed.
        total_f = sum(filter_num)
        bound = 1.0 / (total_f ** 0.5)
        self.fc_w = jax.random.uniform(keys[-2], (total_f, class_size),
                                       minval=-bound, maxval=bound,
                                       dtype=jnp.float32)
        self.fc_b = jax.random.uniform(keys[-1], (1, class_size),
                                       minval=-bound, maxval=bound,
                                       dtype=jnp.float32)

        # ------- kernel-side, lane-aligned re-stacked parameters -------------
        self.max_f = max(filters)
        self.BLK = max(128, ((total_f + 127) // 128) * 128)  # per-tap width
        self.CPAD = max(128, ((class_size + 127) // 128) * 128)

        wstk = np.zeros((word_dim, self.max_f * self.BLK), np.float32)
        cb = np.zeros((1, self.BLK), np.float32)
        pm = np.zeros((self.Lp, self.BLK), np.float32)
        fcw = np.zeros((self.BLK, self.CPAD), np.float32)
        fcb = np.zeros((1, self.CPAD), np.float32)
        base = 0
        for f, fn, w, b in zip(filters, filter_num, self.conv_w, self.conv_b):
            wr = np.asarray(w).reshape(f, word_dim, fn)       # (f, D, fn)
            for j in range(f):
                wstk[:, j * self.BLK + base: j * self.BLK + base + fn] = wr[j]
            cb[0, base:base + fn] = np.asarray(b)[0]
            # window positions t > L - f (incl. sentence padding rows) invalid
            pm[max_sent_len - f + 1:, base:base + fn] = _NEG_MASK
            base += fn
        fcw[:total_f, :class_size] = np.asarray(self.fc_w)
        fcb[0, :class_size] = np.asarray(self.fc_b)[0]

        self.wstack = jnp.asarray(wstk)     # (D, max_f*BLK)
        self.cbias = jnp.asarray(cb)        # (1, BLK)
        self.posmask = jnp.asarray(pm)      # (Lp, BLK)
        self.fcw_pad = jnp.asarray(fcw)     # (BLK, CPAD)
        self.fcb_pad = jnp.asarray(fcb)     # (1, CPAD)

    def __call__(self, inp):
        # inp: (B, L) int32 token ids
        batch = inp.shape[0]
        ids = inp.astype(jnp.int32)
        if self.Lp != self.L:
            # Pad with padding_idx tokens (zero embedding); their extra window
            # positions are excluded by posmask, so semantics are unchanged.
            pad = jnp.full((batch, self.Lp - self.L), self.V + 1, jnp.int32)
            ids = jnp.concatenate([ids, pad], axis=1)
        logits = trec_cnn_forward(ids, self.emb, self.wstack, self.cbias,
                                  self.posmask, self.fcw_pad, self.fcb_pad,
                                  max_f=self.max_f, block_w=self.BLK)
        return logits[:, :self.C]


# ----------------------------------------------------------------------------
# Plain-JAX reference (independent windowed formulation) for correctness check
# ----------------------------------------------------------------------------
def reference_forward(model, inp):
    batch = inp.shape[0]
    L, D = model.L, model.D
    x = jnp.take(model.emb, inp, axis=0).reshape(batch, L * D)
    outs = []
    for f, w, b in zip(model.filters, model.conv_w, model.conv_b):
        n_win = L - f + 1
        wins = jnp.stack([x[:, t * D:t * D + f * D] for t in range(n_win)],
                         axis=1)                        # (B, n_win, f*D)
        s = jnp.einsum('bnk,kf->bnf', wins, w) + b[None]
        s = jnp.maximum(s, 0.0)
        outs.append(s.max(axis=1))
    feats = jnp.concatenate(outs, axis=1)
    return feats @ model.fc_w + model.fc_b


if __name__ == "__main__":
    MAX_SENT_LEN = 16
    WORD_DIM = 32
    VOCAB_SIZE = 100
    CLASS_SIZE = 6
    FILTERS = [3, 4, 5]
    FILTER_NUM = [8, 8, 8]
    BATCH = 4

    key = jax.random.PRNGKey(0)
    k_model, k_inp = jax.random.split(key)

    model = TrecCNNPallas(k_model,
                          max_sent_len=MAX_SENT_LEN,
                          word_dim=WORD_DIM,
                          vocab_size=VOCAB_SIZE,
                          class_size=CLASS_SIZE,
                          filters=FILTERS,
                          filter_num=FILTER_NUM)

    inp = jax.random.randint(k_inp, (BATCH, MAX_SENT_LEN), 0, VOCAB_SIZE + 2,
                             dtype=jnp.int32)

    out = jax.block_until_ready(model(inp))
    ref = jax.block_until_ready(reference_forward(model, inp))

    assert out.shape == (BATCH, CLASS_SIZE), out.shape
    assert jnp.allclose(out, ref, atol=1e-4, rtol=1e-4), (
        "mismatch vs reference")

    print("KERNEL_OK")
</pallas_src>

<mosaic_0001>
module attributes {stable_mosaic.version = 11 : i64} {
  func.func @_trec_cnn_fused_kernel(%arg0: i32, %arg1: memref<4x16xi32, #tpu.memory_space<vmem>>, %arg2: memref<102x32xf32, #tpu.memory_space<vmem>>, %arg3: memref<32x640xf32, #tpu.memory_space<vmem>>, %arg4: memref<1x128xf32, #tpu.memory_space<vmem>>, %arg5: memref<16x128xf32, #tpu.memory_space<vmem>>, %arg6: memref<128x128xf32, #tpu.memory_space<vmem>>, %arg7: memref<1x128xf32, #tpu.memory_space<vmem>>, %arg8: memref<4x128xf32, #tpu.memory_space<vmem>>, %arg9: memref<4x16x128xf32, #tpu.memory_space<vmem>>) attributes {dimension_semantics = [#tpu.dimension_semantics<parallel>], iteration_bounds = array<i64: 1>, scalar_prefetch = 0 : i64, scratch_operands = 1 : i64, tpu.core_type = #tpu.core_type<tc>, window_params = [{transform_indices = @transform_0, window_bounds = array<i64: 4, 16>}, {pipeline_mode = #tpu.pipeline_mode<synchronous>, transform_indices = @transform_1, window_bounds = array<i64: 102, 32>}, {pipeline_mode = #tpu.pipeline_mode<synchronous>, transform_indices = @transform_2, window_bounds = array<i64: 32, 640>}, {pipeline_mode = #tpu.pipeline_mode<synchronous>, transform_indices = @transform_3, window_bounds = array<i64: 1, 128>}, {pipeline_mode = #tpu.pipeline_mode<synchronous>, transform_indices = @transform_4, window_bounds = array<i64: 16, 128>}, {pipeline_mode = #tpu.pipeline_mode<synchronous>, transform_indices = @transform_5, window_bounds = array<i64: 128, 128>}, {pipeline_mode = #tpu.pipeline_mode<synchronous>, transform_indices = @transform_6, window_bounds = array<i64: 1, 128>}, {transform_indices = @transform_7, window_bounds = array<i64: 4, 128>}]} {
    %c0 = arith.constant 0 : index
    %c0_0 = arith.constant 0 : index
    %0 = vector.load %arg1[%c0, %c0_0] : memref<4x16xi32, #tpu.memory_space<vmem>>, vector<4x16xi32>
    %1 = tpu.iota {dimensions = array<i32: 2>} : vector<4x16x102xi32>
    %2 = vector.shape_cast %0 : vector<4x16xi32> to vector<4x16x1xi32>
    %3 = vector.broadcast %2 : vector<4x16x1xi32> to vector<4x16x102xi32>
    %4 = arith.cmpi eq, %3, %1 : vector<4x16x102xi32>
    %5 = arith.extui %4 : vector<4x16x102xi1> to vector<4x16x102xi32>
    %6 = arith.sitofp %5 : vector<4x16x102xi32> to vector<4x16x102xf32>
    %7 = vector.shape_cast %6 : vector<4x16x102xf32> to vector<64x102xf32>
    %c0_1 = arith.constant 0 : index
    %c0_2 = arith.constant 0 : index
    %8 = vector.load %arg2[%c0_1, %c0_2] : memref<102x32xf32, #tpu.memory_space<vmem>>, vector<102x32xf32>
    %cst = arith.constant dense<0.000000e+00> : vector<64x32xf32>
    %9 = tpu.matmul %7, %8, %cst {dimension_numbers = #tpu.dot_dimension_numbers<[1], [0], [0], [1], [0, 0, 1, 1], [], []>} : vector<64x102xf32>, vector<102x32xf32>, vector<64x32xf32> -> vector<64x32xf32>
    %c0_3 = arith.constant 0 : index
    %c0_4 = arith.constant 0 : index
    %10 = vector.load %arg3[%c0_3, %c0_4] : memref<32x640xf32, #tpu.memory_space<vmem>>, vector<32x640xf32>
    %cst_5 = arith.constant dense<0.000000e+00> : vector<64x640xf32>
    %11 = tpu.matmul %9, %10, %cst_5 {dimension_numbers = #tpu.dot_dimension_numbers<[1], [0], [0], [1], [0, 0, 1, 1], [], []>} : vector<64x32xf32>, vector<32x640xf32>, vector<64x640xf32> -> vector<64x640xf32>
    %12 = vector.shape_cast %11 : vector<64x640xf32> to vector<4x16x640xf32>
    %13 = vector.extract_strided_slice %12 {offsets = [0, 0, 0], sizes = [4, 16, 128], strides = [1, 1, 1]} : vector<4x16x640xf32> to vector<4x16x128xf32>
    %c0_6 = arith.constant 0 : index
    %c0_7 = arith.constant 0 : index
    %c0_8 = arith.constant 0 : index
    %14 = vector.load %arg9[%c0_6, %c0_7, %c0_8] : memref<4x16x128xf32, #tpu.memory_space<vmem>>, vector<4x16x128xf32>
    tpu.vector_store %arg9[%c0_6, %c0_7, %c0_8], %13 {strides = array<i32>} : memref<4x16x128xf32, #tpu.memory_space<vmem>>, vector<4x16x128xf32>,
    %c0_9 = arith.constant 0 : index
    %c0_10 = arith.constant 0 : index
    %c0_11 = arith.constant 0 : index
    %15 = vector.load %arg9[%c0_9, %c0_10, %c0_11] : memref<4x16x128xf32, #tpu.memory_space<vmem>>, vector<4x15x128xf32>
    %16 = vector.extract_strided_slice %12 {offsets = [0, 1, 128], sizes = [4, 15, 128], strides = [1, 1, 1]} : vector<4x16x640xf32> to vector<4x15x128xf32>
    %17 = arith.addf %15, %16 : vector<4x15x128xf32>
    %c0_12 = arith.constant 0 : index
    %c0_13 = arith.constant 0 : index
    %c0_14 = arith.constant 0 : index
    %18 = vector.load %arg9[%c0_12, %c0_13, %c0_14] : memref<4x16x128xf32, #tpu.memory_space<vmem>>, vector<4x15x128xf32>
    tpu.vector_store %arg9[%c0_12, %c0_13, %c0_14], %17 {strides = array<i32>} : memref<4x16x128xf32, #tpu.memory_space<vmem>>, vector<4x15x128xf32>,
    %c0_15 = arith.constant 0 : index
    %c0_16 = arith.constant 0 : index
    %c0_17 = arith.constant 0 : index
    %19 = vector.load %arg9[%c0_15, %c0_16, %c0_17] : memref<4x16x128xf32, #tpu.memory_space<vmem>>, vector<4x14x128xf32>
    %20 = vector.extract_strided_slice %12 {offsets = [0, 2, 256], sizes = [4, 14, 128], strides = [1, 1, 1]} : vector<4x16x640xf32> to vector<4x14x128xf32>
    %21 = arith.addf %19, %20 : vector<4x14x128xf32>
    %c0_18 = arith.constant 0 : index
    %c0_19 = arith.constant 0 : index
    %c0_20 = arith.constant 0 : index
    %22 = vector.load %arg9[%c0_18, %c0_19, %c0_20] : memref<4x16x128xf32, #tpu.memory_space<vmem>>, vector<4x14x128xf32>
    tpu.vector_store %arg9[%c0_18, %c0_19, %c0_20], %21 {strides = array<i32>} : memref<4x16x128xf32, #tpu.memory_space<vmem>>, vector<4x14x128xf32>,
    %c0_21 = arith.constant 0 : index
    %c0_22 = arith.constant 0 : index
    %c0_23 = arith.constant 0 : index
    %23 = vector.load %arg9[%c0_21, %c0_22, %c0_23] : memref<4x16x128xf32, #tpu.memory_space<vmem>>, vector<4x13x128xf32>
    %24 = vector.extract_strided_slice %12 {offsets = [0, 3, 384], sizes = [4, 13, 128], strides = [1, 1, 1]} : vector<4x16x640xf32> to vector<4x13x128xf32>
    %25 = arith.addf %23, %24 : vector<4x13x128xf32>
    %c0_24 = arith.constant 0 : index
    %c0_25 = arith.constant 0 : index
    %c0_26 = arith.constant 0 : index
    %26 = vector.load %arg9[%c0_24, %c0_25, %c0_26] : memref<4x16x128xf32, #tpu.memory_space<vmem>>, vector<4x13x128xf32>
    tpu.vector_store %arg9[%c0_24, %c0_25, %c0_26], %25 {strides = array<i32>} : memref<4x16x128xf32, #tpu.memory_space<vmem>>, vector<4x13x128xf32>,
    %c0_27 = arith.constant 0 : index
    %c0_28 = arith.constant 0 : index
    %c0_29 = arith.constant 0 : index
    %27 = vector.load %arg9[%c0_27, %c0_28, %c0_29] : memref<4x16x128xf32, #tpu.memory_space<vmem>>, vector<4x12x128xf32>
    %28 = vector.extract_strided_slice %12 {offsets = [0, 4, 512], sizes = [4, 12, 128], strides = [1, 1, 1]} : vector<4x16x640xf32> to vector<4x12x128xf32>
    %29 = arith.addf %27, %28 : vector<4x12x128xf32>
    %c0_30 = arith.constant 0 : index
    %c0_31 = arith.constant 0 : index
    %c0_32 = arith.constant 0 : index
    %30 = vector.load %arg9[%c0_30, %c0_31, %c0_32] : memref<4x16x128xf32, #tpu.memory_space<vmem>>, vector<4x12x128xf32>
    tpu.vector_store %arg9[%c0_30, %c0_31, %c0_32], %29 {strides = array<i32>} : memref<4x16x128xf32, #tpu.memory_space<vmem>>, vector<4x12x128xf32>,
    %c0_33 = arith.constant 0 : index
    %c0_34 = arith.constant 0 : index
    %c0_35 = arith.constant 0 : index
    %31 = vector.load %arg9[%c0_33, %c0_34, %c0_35] : memref<4x16x128xf32, #tpu.memory_space<vmem>>, vector<4x16x128xf32>
    %c0_36 = arith.constant 0 : index
    %c0_37 = arith.constant 0 : index
    %32 = vector.load %arg5[%c0_36, %c0_37] : memref<16x128xf32, #tpu.memory_space<vmem>>, vector<16x128xf32>
    %33 = vector.shape_cast %32 : vector<16x128xf32> to vector<1x16x128xf32>
    %34 = vector.broadcast %33 : vector<1x16x128xf32> to vector<4x16x128xf32>
    %35 = arith.addf %31, %34 : vector<4x16x128xf32>
    %cst_38 = arith.constant dense<0xFF800000> : vector<4x128xf32>
    %36 = vector.multi_reduction <maximumf>, %35, %cst_38 [1] : vector<4x16x128xf32> to vector<4x128xf32>
    %c0_39 = arith.constant 0 : index
    %c0_40 = arith.constant 0 : index
    %37 = vector.load %arg4[%c0_39, %c0_40] : memref<1x128xf32, #tpu.memory_space<vmem>>, vector<1x128xf32>
    %38 = vector.broadcast %37 : vector<1x128xf32> to vector<4x128xf32>
    %39 = arith.addf %36, %38 : vector<4x128xf32>
    %cst_41 = arith.constant 0.000000e+00 : f32
    %40 = vector.broadcast %cst_41 : f32 to vector<4x128xf32>
    %41 = arith.maximumf %39, %40 : vector<4x128xf32>
    %c0_42 = arith.constant 0 : index
    %c0_43 = arith.constant 0 : index
    %42 = vector.load %arg6[%c0_42, %c0_43] : memref<128x128xf32, #tpu.memory_space<vmem>>, vector<128x128xf32>
    %cst_44 = arith.constant dense<0.000000e+00> : vector<4x128xf32>
    %43 = tpu.matmul %41, %42, %cst_44 {dimension_numbers = #tpu.dot_dimension_numbers<[1], [0], [0], [1], [0, 0, 1, 1], [], []>} : vector<4x128xf32>, vector<128x128xf32>, vector<4x128xf32> -> vector<4x128xf32>
    %c0_45 = arith.constant 0 : index
    %c0_46 = arith.constant 0 : index
    %44 = vector.load %arg7[%c0_45, %c0_46] : memref<1x128xf32, #tpu.memory_space<vmem>>, vector<1x128xf32>
    %45 = vector.broadcast %44 : vector<1x128xf32> to vector<4x128xf32>
    %46 = arith.addf %43, %45 : vector<4x128xf32>
    %c0_47 = arith.constant 0 : index
    %c0_48 = arith.constant 0 : index
    %47 = vector.load %arg8[%c0_47, %c0_48] : memref<4x128xf32, #tpu.memory_space<vmem>>, vector<4x128xf32>
    tpu.vector_store %arg8[%c0_47, %c0_48], %46 {strides = array<i32>} : memref<4x128xf32, #tpu.memory_space<vmem>>, vector<4x128xf32>,
    return
  }
  func.func @transform_0(%arg0: i32) -> (i32, i32) {
    %c0_i32 = arith.constant 0 : i32
    %c0_i32_0 = arith.constant 0 : i32
    return %arg0, %c0_i32 : i32, i32
  }
  func.func @transform_1(%arg0: i32) -> (i32, i32) {
    %c0_i32 = arith.constant 0 : i32
    %c0_i32_0 = arith.constant 0 : i32
    %c0_i32_1 = arith.constant 0 : i32
    return %c0_i32, %c0_i32_0 : i32, i32
  }
  func.func @transform_2(%arg0: i32) -> (i32, i32) {
    %c0_i32 = arith.constant 0 : i32
    %c0_i32_0 = arith.constant 0 : i32
    %c0_i32_1 = arith.constant 0 : i32
    return %c0_i32, %c0_i32_0 : i32, i32
  }
  func.func @transform_3(%arg0: i32) -> (i32, i32) {
    %c0_i32 = arith.constant 0 : i32
    %c0_i32_0 = arith.constant 0 : i32
    %c0_i32_1 = arith.constant 0 : i32
    return %c0_i32, %c0_i32_0 : i32, i32
  }
  func.func @transform_4(%arg0: i32) -> (i32, i32) {
    %c0_i32 = arith.constant 0 : i32
    %c0_i32_0 = arith.constant 0 : i32
    %c0_i32_1 = arith.constant 0 : i32
    return %c0_i32, %c0_i32_0 : i32, i32
  }
  func.func @transform_5(%arg0: i32) -> (i32, i32) {
    %c0_i32 = arith.constant 0 : i32
    %c0_i32_0 = arith.constant 0 : i32
    %c0_i32_1 = arith.constant 0 : i32
    return %c0_i32, %c0_i32_0 : i32, i32
  }
  func.func @transform_6(%arg0: i32) -> (i32, i32) {
    %c0_i32 = arith.constant 0 : i32
    %c0_i32_0 = arith.constant 0 : i32
    %c0_i32_1 = arith.constant 0 : i32
    return %c0_i32, %c0_i32_0 : i32, i32
  }
  func.func @transform_7(%arg0: i32) -> (i32, i32) {
    %c0_i32 = arith.constant 0 : i32
    %c0_i32_0 = arith.constant 0 : i32
    return %arg0, %c0_i32 : i32, i32
  }
}

</mosaic_0001>

<llo_original>
// kernel: tpu_custom_call.1
$region0: #{tpu_custom_call.1}
  #allocation0 [shape = 'u32[]', space=smem, size = 0x4, offset = 0x4, fixed_abs, tag = 'smem constant byte address 0x4 - core index']
  #allocation1 [shape = 'u32[72,128]{1,0:T(1,128)}', space=vmem, size = 0x9000, scoped, tag = 'internal scratch']
  #allocation2 [shape = 'f32[4,16,128]{2,1,0:T(8,128)}', space=vmem, size = 0x8000, scoped, tag = 'scratch operand']
  %s0 = inlined_call_operand.vmem [shape: s32[4,16], index: 0, kind: input, shape index: {}]
  %s1 = inlined_call_operand.vmem [shape: f32[102,32], index: 1, kind: input, shape index: {}]
  %s2 = inlined_call_operand.hbm [shape: f32[32,640], index: 2, kind: input, shape index: {}]
  %s3 = inlined_call_operand.vmem [shape: f32[1,128], index: 3, kind: input, shape index: {}]
  %s4 = inlined_call_operand.hbm [shape: f32[16,128], index: 4, kind: input, shape index: {}]
  %s5 = inlined_call_operand.vmem [shape: f32[128,128], index: 5, kind: input, shape index: {}]
  %s6 = inlined_call_operand.vmem [shape: f32[1,128], index: 6, kind: input, shape index: {}]
  %s7 = inlined_call_operand.hbm [shape: f32[4,128], index: 7, kind: output, shape index: {}]
  %s8 = sld [smem:[#allocation0]]
  $region46: #{tpu_custom_call.1} parent=0
    _
  %s10 = ssub.s32 1, %s8
  %s11 = scalar_select 0, %s10, %s8
  $region1: #{tpu_custom_call.1} parent=0
    #allocation3 [shape = 'u8[81920]{0}', space=vmem, size = 0x14000, scoped, tag = 'input window, operand 2, single buffered']
    #allocation4 [shape = 's32[1]{0}', space=sflag, size = 0x4, scoped, tag = 'scoped memory for tpu_custom_call.1']
    #allocation5 [shape = 's32[1]{0}', space=sflag, size = 0x4, scoped, tag = 'scoped memory for tpu_custom_call.1']
    #allocation6 [shape = 'u8[8192]{0}', space=vmem, size = 0x2000, scoped, tag = 'input window, operand 4, single buffered']
    #allocation7 [shape = 's32[1]{0}', space=sflag, size = 0x4, scoped, tag = 'scoped memory for tpu_custom_call.1']
    #allocation8 [shape = 'u8[2048]{0}', space=vmem, size = 0x800, scoped, tag = 'output window, operand 0, single buffered']
    %12 = vsyncpa [#allocation4], 0
    %13 = vsyncpa [#allocation7], 0
    %14 = vsyncpa [#allocation5], 0
    // Predicated region
    $region2: #{tpu_custom_call.1} parent=1 // pred_check
      _
    $region3: #{tpu_custom_call.1} parent=1 // pred_check_branch
      %16 = sbr.rel (0) target = $region5
    $region4: #{tpu_custom_call.1} parent=1 // pred_region
      _
    $region5: #{tpu_custom_call.1} parent=1 // pred_fallthru
      _
    // Predicated region
    $region6: #{tpu_custom_call.1} parent=1 // pred_check
      _
    $region7: #{tpu_custom_call.1} parent=1 // pred_check_branch
      %18 = sbr.rel (0) target = $region9
    $region8: #{tpu_custom_call.1} parent=1 // pred_region
      _
    $region9: #{tpu_custom_call.1} parent=1 // pred_fallthru
      _
    // Predicated region
    $region10: #{tpu_custom_call.1} parent=1 // pred_check
      _
    $region11: #{tpu_custom_call.1} parent=1 // pred_check_branch
      %20 = sbr.rel (0) target = $region13
    $region12: #{tpu_custom_call.1} parent=1 // pred_region
      %22 = vsyncadd [#allocation4], 0
      %s23 = sshll.u32 %s2, 4
      %s24 = int_to_ptr.hbm [resolvable:$true] %s23
      %s25 = sshll.u32 [#allocation3], 4
      %s26 = int_to_ptr.vmem [resolvable:$true] %s25
      %31 = dma.hbm_to_vmem [thread:$0]  %s24, 2560, %s26, [#allocation4], 640, 640, 40
    $region13: #{tpu_custom_call.1} parent=1 // pred_fallthru
      _
    // Predicated region
    $region14: #{tpu_custom_call.1} parent=1 // pred_check
      _
    $region15: #{tpu_custom_call.1} parent=1 // pred_check_branch
      %33 = sbr.rel (0) target = $region17
    $region16: #{tpu_custom_call.1} parent=1 // pred_region
      _
    $region17: #{tpu_custom_call.1} parent=1 // pred_fallthru
      _
    // Predicated region
    $region18: #{tpu_custom_call.1} parent=1 // pred_check
      _
    $region19: #{tpu_custom_call.1} parent=1 // pred_check_branch
      %35 = sbr.rel (0) target = $region21
    $region20: #{tpu_custom_call.1} parent=1 // pred_region
      %37 = vsyncadd [#allocation7], 0
      %s38 = sshll.u32 %s4, 4
      %s39 = int_to_ptr.hbm [resolvable:$true] %s38
      %s40 = sshll.u32 [#allocation6], 4
      %s41 = int_to_ptr.vmem [resolvable:$true] %s40
      %46 = dma.hbm_to_vmem [thread:$0]  %s39, 256, %s41, [#allocation7], 128, 128, 8
    $region21: #{tpu_custom_call.1} parent=1 // pred_fallthru
      _
    // Predicated region
    $region22: #{tpu_custom_call.1} parent=1 // pred_check
      _
    $region23: #{tpu_custom_call.1} parent=1 // pred_check_branch
      %48 = sbr.rel (0) target = $region25
    $region24: #{tpu_custom_call.1} parent=1 // pred_region
      _
    $region25: #{tpu_custom_call.1} parent=1 // pred_fallthru
      _
    // Predicated region
    $region26: #{tpu_custom_call.1} parent=1 // pred_check
      _
    $region27: #{tpu_custom_call.1} parent=1 // pred_check_branch
      %50 = sbr.rel (0) target = $region29
    $region28: #{tpu_custom_call.1} parent=1 // pred_region
      _
    $region29: #{tpu_custom_call.1} parent=1 // pred_fallthru
      _
    // Predicated region
    $region30: #{tpu_custom_call.1} parent=1 // pred_check
      _
    $region31: #{tpu_custom_call.1} parent=1 // pred_check_branch
      %52 = sbr.rel (0) target = $region33
    $region32: #{tpu_custom_call.1} parent=1 // pred_region
      %54 = dma.done [#allocation4], 2560
    $region33: #{tpu_custom_call.1} parent=1 // pred_fallthru
      _
    // Predicated region
    $region34: #{tpu_custom_call.1} parent=1 // pred_check
      _
    $region35: #{tpu_custom_call.1} parent=1 // pred_check_branch
      %56 = sbr.rel (0) target = $region37
    $region36: #{tpu_custom_call.1} parent=1 // pred_region
      %58 = dma.done [#allocation7], 256
    $region37: #{tpu_custom_call.1} parent=1 // pred_fallthru
      _
    %v59 = vld [vmem:[%s0] sm:$0xf]
    %v60 = vlaneseq
    %v61 = vand.u32 %v60, 127
    %v62 = vperm.slane %v59, 0
    %v63 = vlaneseq
    %v64 = vshrl.u32 %v63, 7
    %66 = vset.pattern.permute.xlu0 %v64
    %67 = vperm.xlu0 %66, %v62
    %v68 = vpop.permute.xlu0 %67
    %v69 = vlaneseq
    %v70 = vshrl.u32 %v69, 7
    %v71 = vadd.s32 %v70, 8
    %72 = vset.pattern.permute.xlu0 %v71
    %73 = vperm.xlu0 %72, %v62
    %v74 = vpop.permute.xlu0 %73
    %v75 = vperm.slane %v59, 1
    %v76 = vlaneseq
    %v77 = vshrl.u32 %v76, 7
    %79 = vset.pattern.permute.xlu0 %v77
    %80 = vperm.xlu0 %79, %v75
    %v81 = vpop.permute.xlu0 %80
    %v82 = vlaneseq
    %v83 = vshrl.u32 %v82, 7
    %v84 = vadd.s32 %v83, 8
    %85 = vset.pattern.permute.xlu0 %v84
    %86 = vperm.xlu0 %85, %v75
    %v87 = vpop.permute.xlu0 %86
    %v88 = vperm.slane %v59, 2
    %v89 = vlaneseq
    %v90 = vshrl.u32 %v89, 7
    %92 = vset.pattern.permute.xlu0 %v90
    %93 = vperm.xlu0 %92, %v88
    %v94 = vpop.permute.xlu0 %93
    %v95 = vlaneseq
    %v96 = vshrl.u32 %v95, 7
    %v97 = vadd.s32 %v96, 8
    %98 = vset.pattern.permute.xlu0 %v97
    %99 = vperm.xlu0 %98, %v88
    %v100 = vpop.permute.xlu0 %99
    %v101 = vperm.slane %v59, 3
    %v102 = vlaneseq
    %v103 = vshrl.u32 %v102, 7
    %105 = vset.pattern.permute.xlu0 %v103
    %106 = vperm.xlu0 %105, %v101
    %v107 = vpop.permute.xlu0 %106
    %v108 = vlaneseq
    %v109 = vshrl.u32 %v108, 7
    %v110 = vadd.s32 %v109, 8
    %111 = vset.pattern.permute.xlu0 %v110
    %112 = vperm.xlu0 %111, %v101
    %v113 = vpop.permute.xlu0 %112
    %vm114 = vcmp.eq.s32.totalorder %v68, %v61
    %vm115 = vcmp.eq.s32.totalorder %v74, %v61
    %vm116 = vcmp.eq.s32.totalorder %v81, %v61
    %vm117 = vcmp.eq.s32.totalorder %v87, %v61
    %vm118 = vcmp.eq.s32.totalorder %v94, %v61
    %vm119 = vcmp.eq.s32.totalorder %v100, %v61
    %vm120 = vcmp.eq.s32.totalorder %v107, %v61
    %vm121 = vcmp.eq.s32.totalorder %v113, %v61
    %v122 = vsel %vm114, 1, 0
    %v123 = vsel %vm115, 1, 0
    %v124 = vsel %vm116, 1, 0
    %v125 = vsel %vm117, 1, 0
    %v126 = vsel %vm118, 1, 0
    %v127 = vsel %vm119, 1, 0
    %v128 = vsel %vm120, 1, 0
    %v129 = vsel %vm121, 1, 0
    %v130 = vcvt.s32.f32 %v122
    %v131 = vcvt.s32.f32 %v123
    %v132 = vcvt.s32.f32 %v124
    %v133 = vcvt.s32.f32 %v125
    %v134 = vcvt.s32.f32 %v126
    %v135 = vcvt.s32.f32 %v127
    %v136 = vcvt.s32.f32 %v128
    %v137 = vcvt.s32.f32 %v129
    %v138 = vld [vmem:[%s1] sm:$0xff]
    %v139 = vld [vmem:[%s1 + $0x8] sm:$0xff]
    %v140 = vld [vmem:[%s1 + $0x10] sm:$0xff]
    %v141 = vld [vmem:[%s1 + $0x18] sm:$0xff]
    %v142 = vld [vmem:[%s1 + $0x20] sm:$0xff]
    %v143 = vld [vmem:[%s1 + $0x28] sm:$0xff]
    %v144 = vld [vmem:[%s1 + $0x30] sm:$0xff]
    %v145 = vld [vmem:[%s1 + $0x38] sm:$0xff]
    %v146 = vld [vmem:[%s1 + $0x40] sm:$0xff]
    %v147 = vld [vmem:[%s1 + $0x48] sm:$0xff]
    %v148 = vld [vmem:[%s1 + $0x50] sm:$0xff]
    %v149 = vld [vmem:[%s1 + $0x58] sm:$0xff]
    %v150 = vld [vmem:[%s1 + $0x60] sm:$0x3f]
    %vm151 = vcmask 834560
    %v153 = vsel %vm151, %v130, 0
    %v156 = vsel %vm151, %v131, 0
    %v159 = vsel %vm151, %v132, 0
    %v162 = vsel %vm151, %v133, 0
    %v165 = vsel %vm151, %v134, 0
    %v168 = vsel %vm151, %v135, 0
    %v171 = vsel %vm151, %v136, 0
    %v174 = vsel %vm151, %v137, 0
    %vm176 = vcmask 1045504
    %v178 = vsel %vm176, %v150, 0
    %180 = vmatpush.msra.mxu0 0.0
    %181 = vmatpush.msra.mxu0 0.0
    %182 = vmatpush.msra.mxu0 0.0
    %183 = vmatpush.msra.mxu0 %v178
    %184 = vmatpush.msra.mxu0 %v149
    %185 = vmatpush.msra.mxu0 %v148
    %186 = vmatpush.msra.mxu0 %v147
    %187 = vmatpush.msra.mxu0 %v146
    %188 = vmatpush.msra.mxu0 %v145
    %189 = vmatpush.msra.mxu0 %v144
    %190 = vmatpush.msra.mxu0 %v143
    %191 = vmatpush.msra.mxu0 %v142
    %192 = vmatpush.msra.mxu0 %v141
    %193 = vmatpush.msra.mxu0 %v140
    %194 = vmatpush.msra.mxu0 %v139
    %195 = vmatpush.msra.mxu0 %v138
    %196 = vmatmul.f32.gmra.mxu0 %v153
    %v197 = vpop.f32.mrf.mxu0
    %v198 = vadd.f32 0.0, %v197
    %199 = vmatmul.f32.gmra.mxu0 %v156
    %v200 = vpop.f32.mrf.mxu0
    %v201 = vadd.f32 0.0, %v200
    %202 = vmatmul.f32.gmra.mxu0 %v159
    %v203 = vpop.f32.mrf.mxu0
    %v204 = vadd.f32 0.0, %v203
    %205 = vmatmul.f32.gmra.mxu0 %v162
    %v206 = vpop.f32.mrf.mxu0
    %v207 = vadd.f32 0.0, %v206
    %208 = vmatmul.f32.gmra.mxu0 %v165
    %v209 = vpop.f32.mrf.mxu0
    %v210 = vadd.f32 0.0, %v209
    %211 = vmatmul.f32.gmra.mxu0 %v168
    %v212 = vpop.f32.mrf.mxu0
    %v213 = vadd.f32 0.0, %v212
    %214 = vmatmul.f32.gmra.mxu0 %v171
    %v215 = vpop.f32.mrf.mxu0
    %v216 = vadd.f32 0.0, %v215
    %217 = vmatmul.f32.gmra.mxu0 %v174
    %v218 = vpop.f32.mrf.mxu0
    %v219 = vadd.f32 0.0, %v218
    %220 = vdwg.mxu0
    %v221 = vld [vmem:[#allocation3] sm:$0xff]
    %v222 = vld [vmem:[#allocation3 + $0x8] sm:$0xff]
    %v223 = vld [vmem:[#allocation3 + $0x10] sm:$0xff]
    %v224 = vld [vmem:[#allocation3 + $0x18] sm:$0xff]
    %v225 = vld [vmem:[#allocation3 + $0x20] sm:$0xff]
    %v226 = vld [vmem:[#allocation3 + $0x28] sm:$0xff]
    %v227 = vld [vmem:[#allocation3 + $0x30] sm:$0xff]
    %v228 = vld [vmem:[#allocation3 + $0x38] sm:$0xff]
    %v229 = vld [vmem:[#allocation3 + $0x40] sm:$0xff]
    %v230 = vld [vmem:[#allocation3 + $0x48] sm:$0xff]
    %v231 = vld [vmem:[#allocation3 + $0x50] sm:$0xff]
    %v232 = vld [vmem:[#allocation3 + $0x58] sm:$0xff]
    %v233 = vld [vmem:[#allocation3 + $0x60] sm:$0xff]
    %v234 = vld [vmem:[#allocation3 + $0x68] sm:$0xff]
    %v235 = vld [vmem:[#allocation3 + $0x70] sm:$0xff]
    %v236 = vld [vmem:[#allocation3 + $0x78] sm:$0xff]
    %v237 = vld [vmem:[#allocation3 + $0x80] sm:$0xff]
    %v238 = vld [vmem:[#allocation3 + $0x88] sm:$0xff]
    %v239 = vld [vmem:[#allocation3 + $0x90] sm:$0xff]
    %v240 = vld [vmem:[#allocation3 + $0x98] sm:$0xff]
    %vm241 = vcmask 261120
    %v243 = vsel %vm241, %v198, 0
    %v246 = vsel %vm241, %v201, 0
    %v249 = vsel %vm241, %v204, 0
    %v252 = vsel %vm241, %v207, 0
    %v255 = vsel %vm241, %v210, 0
    %v258 = vsel %vm241, %v213, 0
    %v261 = vsel %vm241, %v216, 0
    %v264 = vsel %vm241, %v219, 0
    %266 = vmatpush.msra.mxu0 0.0
    %267 = vmatpush.msra.mxu0 0.0
    %268 = vmatpush.msra.mxu0 0.0
    %269 = vmatpush.msra.mxu0 0.0
    %270 = vmatpush.msra.mxu0 0.0
    %271 = vmatpush.msra.mxu0 0.0
    %272 = vmatpush.msra.mxu0 0.0
    %273 = vmatpush.msra.mxu0 0.0
    %274 = vmatpush.msra.mxu0 0.0
    %275 = vmatpush.msra.mxu0 0.0
    %276 = vmatpush.msra.mxu0 0.0
    %277 = vmatpush.msra.mxu0 0.0
    %278 = vmatpush.msra.mxu0 %v236
    %279 = vmatpush.msra.mxu0 %v231
    %280 = vmatpush.msra.mxu0 %v226
    %281 = vmatpush.msra.mxu0 %v221
    %282 = vmatmul.f32.gmra.mxu0 %v243
    %v283 = vpop.f32.mrf.mxu0
    %v284 = vadd.f32 0.0, %v283
    %285 = vmatmul.f32.gmra.mxu0 %v246
    %v286 = vpop.f32.mrf.mxu0
    %v287 = vadd.f32 0.0, %v286
    %288 = vmatmul.f32.gmra.mxu0 %v249
    %v289 = vpop.f32.mrf.mxu0
    %v290 = vadd.f32 0.0, %v289
    %291 = vmatmul.f32.gmra.mxu0 %v252
    %v292 = vpop.f32.mrf.mxu0
    %v293 = vadd.f32 0.0, %v292
    %294 = vmatmul.f32.gmra.mxu0 %v255
    %v295 = vpop.f32.mrf.mxu0
    %v296 = vadd.f32 0.0, %v295
    %297 = vmatmul.f32.gmra.mxu0 %v258
    %v298 = vpop.f32.mrf.mxu0
    %v299 = vadd.f32 0.0, %v298
    %300 = vmatmul.f32.gmra.mxu0 %v261
    %v301 = vpop.f32.mrf.mxu0
    %v302 = vadd.f32 0.0, %v301
    %303 = vmatmul.f32.gmra.mxu0 %v264
    %v304 = vpop.f32.mrf.mxu0
    %v305 = vadd.f32 0.0, %v304
    %306 = vdwg.mxu0
    %307 = vmatpush.msra.mxu0 0.0
    %308 = vmatpush.msra.mxu0 0.0
    %309 = vmatpush.msra.mxu0 0.0
    %310 = vmatpush.msra.mxu0 0.0
    %311 = vmatpush.msra.mxu0 0.0
    %312 = vmatpush.msra.mxu0 0.0
    %313 = vmatpush.msra.mxu0 0.0
    %314 = vmatpush.msra.mxu0 0.0
    %315 = vmatpush.msra.mxu0 0.0
    %316 = vmatpush.msra.mxu0 0.0
    %317 = vmatpush.msra.mxu0 0.0
    %318 = vmatpush.msra.mxu0 0.0
    %319 = vmatpush.msra.mxu0 %v237
    %320 = vmatpush.msra.mxu0 %v232
    %321 = vmatpush.msra.mxu0 %v227
    %322 = vmatpush.msra.mxu0 %v222
    %323 = vmatmul.f32.gmra.mxu0 %v243
    %v324 = vpop.f32.mrf.mxu0
    %v325 = vadd.f32 0.0, %v324
    %326 = vmatmul.f32.gmra.mxu0 %v246
    %v327 = vpop.f32.mrf.mxu0
    %v328 = vadd.f32 0.0, %v327
    %329 = vmatmul.f32.gmra.mxu0 %v249
    %v330 = vpop.f32.mrf.mxu0
    %v331 = vadd.f32 0.0, %v330
    %332 = vmatmul.f32.gmra.mxu0 %v252
    %v333 = vpop.f32.mrf.mxu0
    %v334 = vadd.f32 0.0, %v333
    %335 = vmatmul.f32.gmra.mxu0 %v255
    %v336 = vpop.f32.mrf.mxu0
    %v337 = vadd.f32 0.0, %v336
    %338 = vmatmul.f32.gmra.mxu0 %v258
    %v339 = vpop.f32.mrf.mxu0
    %v340 = vadd.f32 0.0, %v339
    %341 = vmatmul.f32.gmra.mxu0 %v261
    %v342 = vpop.f32.mrf.mxu0
    %v343 = vadd.f32 0.0, %v342
    %344 = vmatmul.f32.gmra.mxu0 %v264
    %v345 = vpop.f32.mrf.mxu0
    %v346 = vadd.f32 0.0, %v345
    %347 = vdwg.mxu0
    %348 = vmatpush.msra.mxu0 0.0
    %349 = vmatpush.msra.mxu0 0.0
    %350 = vmatpush.msra.mxu0 0.0
    %351 = vmatpush.msra.mxu0 0.0
    %352 = vmatpush.msra.mxu0 0.0
    %353 = vmatpush.msra.mxu0 0.0
    %354 = vmatpush.msra.mxu0 0.0
    %355 = vmatpush.msra.mxu0 0.0
    %356 = vmatpush.msra.mxu0 0.0
    %357 = vmatpush.msra.mxu0 0.0
    %358 = vmatpush.msra.mxu0 0.0
    %359 = vmatpush.msra.mxu0 0.0
    %360 = vmatpush.msra.mxu0 %v238
    %361 = vmatpush.msra.mxu0 %v233
    %362 = vmatpush.msra.mxu0 %v228
    %363 = vmatpush.msra.mxu0 %v223
    %364 = vmatmul.f32.gmra.mxu0 %v243
    %v365 = vpop.f32.mrf.mxu0
    %v366 = vadd.f32 0.0, %v365
    %367 = vmatmul.f32.gmra.mxu0 %v246
    %v368 = vpop.f32.mrf.mxu0
    %v369 = vadd.f32 0.0, %v368
    %370 = vmatmul.f32.gmra.mxu0 %v249
    %v371 = vpop.f32.mrf.mxu0
    %v372 = vadd.f32 0.0, %v371
    %373 = vmatmul.f32.gmra.mxu0 %v252
    %v374 = vpop.f32.mrf.mxu0
    %v375 = vadd.f32 0.0, %v374
    %376 = vmatmul.f32.gmra.mxu0 %v255
    %v377 = vpop.f32.mrf.mxu0
    %v378 = vadd.f32 0.0, %v377
    %379 = vmatmul.f32.gmra.mxu0 %v258
    %v380 = vpop.f32.mrf.mxu0
    %v381 = vadd.f32 0.0, %v380
    %382 = vmatmul.f32.gmra.mxu0 %v261
    %v383 = vpop.f32.mrf.mxu0
    %v384 = vadd.f32 0.0, %v383
    %385 = vmatmul.f32.gmra.mxu0 %v264
    %v386 = vpop.f32.mrf.mxu0
    %v387 = vadd.f32 0.0, %v386
    %388 = vdwg.mxu0
    %389 = vmatpush.msra.mxu0 0.0
    %390 = vmatpush.msra.mxu0 0.0
    %391 = vmatpush.msra.mxu0 0.0
    %392 = vmatpush.msra.mxu0 0.0
    %393 = vmatpush.msra.mxu0 0.0
    %394 = vmatpush.msra.mxu0 0.0
    %395 = vmatpush.msra.mxu0 0.0
    %396 = vmatpush.msra.mxu0 0.0
    %397 = vmatpush.msra.mxu0 0.0
    %398 = vmatpush.msra.mxu0 0.0
    %399 = vmatpush.msra.mxu0 0.0
    %400 = vmatpush.msra.mxu0 0.0
    %401 = vmatpush.msra.mxu0 %v239
    %402 = vmatpush.msra.mxu0 %v234
    %403 = vmatpush.msra.mxu0 %v229
    %404 = vmatpush.msra.mxu0 %v224
    %405 = vmatmul.f32.gmra.mxu0 %v243
    %v406 = vpop.f32.mrf.mxu0
    %v407 = vadd.f32 0.0, %v406
    %408 = vmatmul.f32.gmra.mxu0 %v246
    %v409 = vpop.f32.mrf.mxu0
    %v410 = vadd.f32 0.0, %v409
    %411 = vmatmul.f32.gmra.mxu0 %v249
    %v412 = vpop.f32.mrf.mxu0
    %v413 = vadd.f32 0.0, %v412
    %414 = vmatmul.f32.gmra.mxu0 %v252
    %v415 = vpop.f32.mrf.mxu0
    %v416 = vadd.f32 0.0, %v415
    %417 = vmatmul.f32.gmra.mxu0 %v255
    %v418 = vpop.f32.mrf.mxu0
    %v419 = vadd.f32 0.0, %v418
    %420 = vmatmul.f32.gmra.mxu0 %v258
    %v421 = vpop.f32.mrf.mxu0
    %v422 = vadd.f32 0.0, %v421
    %423 = vmatmul.f32.gmra.mxu0 %v261
    %v424 = vpop.f32.mrf.mxu0
    %v425 = vadd.f32 0.0, %v424
    %426 = vmatmul.f32.gmra.mxu0 %v264
    %v427 = vpop.f32.mrf.mxu0
    %v428 = vadd.f32 0.0, %v427
    %429 = vdwg.mxu0
    %430 = vmatpush.msra.mxu0 0.0
    %431 = vmatpush.msra.mxu0 0.0
    %432 = vmatpush.msra.mxu0 0.0
    %433 = vmatpush.msra.mxu0 0.0
    %434 = vmatpush.msra.mxu0 0.0
    %435 = vmatpush.msra.mxu0 0.0
    %436 = vmatpush.msra.mxu0 0.0
    %437 = vmatpush.msra.mxu0 0.0
    %438 = vmatpush.msra.mxu0 0.0
    %439 = vmatpush.msra.mxu0 0.0
    %440 = vmatpush.msra.mxu0 0.0
    %441 = vmatpush.msra.mxu0 0.0
    %442 = vmatpush.msra.mxu0 %v240
    %443 = vmatpush.msra.mxu0 %v235
    %444 = vmatpush.msra.mxu0 %v230
    %445 = vmatpush.msra.mxu0 %v225
    %446 = vmatmul.f32.gmra.mxu0 %v243
    %v447 = vpop.f32.mrf.mxu0
    %v448 = vadd.f32 0.0, %v447
    %449 = vmatmul.f32.gmra.mxu0 %v246
    %v450 = vpop.f32.mrf.mxu0
    %v451 = vadd.f32 0.0, %v450
    %452 = vmatmul.f32.gmra.mxu0 %v249
    %v453 = vpop.f32.mrf.mxu0
    %v454 = vadd.f32 0.0, %v453
    %455 = vmatmul.f32.gmra.mxu0 %v252
    %v456 = vpop.f32.mrf.mxu0
    %v457 = vadd.f32 0.0, %v456
    %458 = vmatmul.f32.gmra.mxu0 %v255
    %v459 = vpop.f32.mrf.mxu0
    %v460 = vadd.f32 0.0, %v459
    %461 = vmatmul.f32.gmra.mxu0 %v258
    %v462 = vpop.f32.mrf.mxu0
    %v463 = vadd.f32 0.0, %v462
    %464 = vmatmul.f32.gmra.mxu0 %v261
    %v465 = vpop.f32.mrf.mxu0
    %v466 = vadd.f32 0.0, %v465
    %467 = vmatmul.f32.gmra.mxu0 %v264
    %v468 = vpop.f32.mrf.mxu0
    %v469 = vadd.f32 0.0, %v468
    %470 = vdwg.mxu0
    %471 = vst [vmem:[#allocation2] sm:$0xff] %v284
    %472 = vst [vmem:[#allocation2 + $0x8] sm:$0xff] %v287
    %473 = vst [vmem:[#allocation2 + $0x10] sm:$0xff] %v290
    %474 = vst [vmem:[#allocation2 + $0x18] sm:$0xff] %v293
    %475 = vst [vmem:[#allocation2 + $0x20] sm:$0xff] %v296
    %476 = vst [vmem:[#allocation2 + $0x28] sm:$0xff] %v299
    %477 = vst [vmem:[#allocation2 + $0x30] sm:$0xff] %v302
    %478 = vst [vmem:[#allocation2 + $0x38] sm:$0xff] %v305
    %v479 = vld [vmem:[#allocation2] sm:$0xff]
    %v480 = vld [vmem:[#allocation2 + $0x8] sm:$0x7f]
    %v481 = vld [vmem:[#allocation2 + $0x10] sm:$0xff]
    %v482 = vld [vmem:[#allocation2 + $0x18] sm:$0x7f]
    %v483 = vld [vmem:[#allocation2 + $0x20] sm:$0xff]
    %v484 = vld [vmem:[#allocation2 + $0x28] sm:$0x7f]
    %v485 = vld [vmem:[#allocation2 + $0x30] sm:$0xff]
    %v486 = vld [vmem:[#allocation2 + $0x38] sm:$0x7f]
    %vm495 = vcmask 1046528
    %v496 = vrot.slane %v325, 1
    %v497 = vrot.slane %v328, 1
    %v498 = vsel %vm495, %v496, %v497
    %v499 = vrot.slane %v331, 1
    %v500 = vrot.slane %v334, 1
    %v501 = vsel %vm495, %v499, %v500
    %v502 = vrot.slane %v337, 1
    %v503 = vrot.slane %v340, 1
    %v504 = vsel %vm495, %v502, %v503
    %v505 = vrot.slane %v343, 1
    %v506 = vrot.slane %v346, 1
    %v507 = vsel %vm495, %v505, %v506
    %v516 = vadd.f32 %v479, %v498
    %v517 = vadd.f32 %v480, %v497
    %v518 = vadd.f32 %v481, %v501
    %v519 = vadd.f32 %v482, %v500
    %v520 = vadd.f32 %v483, %v504
    %v521 = vadd.f32 %v484, %v503
    %v522 = vadd.f32 %v485, %v507
    %v523 = vadd.f32 %v486, %v506
    %524 = vst [vmem:[#allocation2] sm:$0xff] %v516
    %525 = vst [vmem:[#allocation2 + $0x8] sm:$0x7f] %v517
    %526 = vst [vmem:[#allocation2 + $0x10] sm:$0xff] %v518
    %527 = vst [vmem:[#allocation2 + $0x18] sm:$0x7f] %v519
    %528 = vst [vmem:[#allocation2 + $0x20] sm:$0xff] %v520
    %529 = vst [vmem:[#allocation2 + $0x28] sm:$0x7f] %v521
    %530 = vst [vmem:[#allocation2 + $0x30] sm:$0xff] %v522
    %531 = vst [vmem:[#allocation2 + $0x38] sm:$0x7f] %v523
    %v532 = vld [vmem:[#allocation2] sm:$0xff]
    %v533 = vld [vmem:[#allocation2 + $0x8] sm:$0x3f]
    %v534 = vld [vmem:[#allocation2 + $0x10] sm:$0xff]
    %v535 = vld [vmem:[#allocation2 + $0x18] sm:$0x3f]
    %v536 = vld [vmem:[#allocation2 + $0x20] sm:$0xff]
    %v537 = vld [vmem:[#allocation2 + $0x28] sm:$0x3f]
    %v538 = vld [vmem:[#allocation2 + $0x30] sm:$0xff]
    %v539 = vld [vmem:[#allocation2 + $0x38] sm:$0x3f]
    %v548 = vrot.slane %v366, 2
    %v549 = vrot.slane %v369, 2
    %v550 = vsel %vm176, %v548, %v549
    %v551 = vrot.slane %v372, 2
    %v552 = vrot.slane %v375, 2
    %v553 = vsel %vm176, %v551, %v552
    %v554 = vrot.slane %v378, 2
    %v555 = vrot.slane %v381, 2
    %v556 = vsel %vm176, %v554, %v555
    %v557 = vrot.slane %v384, 2
    %v558 = vrot.slane %v387, 2
    %v559 = vsel %vm176, %v557, %v558
    %v568 = vadd.f32 %v532, %v550
    %v569 = vadd.f32 %v533, %v549
    %v570 = vadd.f32 %v534, %v553
    %v571 = vadd.f32 %v535, %v552
    %v572 = vadd.f32 %v536, %v556
    %v573 = vadd.f32 %v537, %v555
    %v574 = vadd.f32 %v538, %v559
    %v575 = vadd.f32 %v539, %v558
    %576 = vst [vmem:[#allocation2] sm:$0xff] %v568
    %577 = vst [vmem:[#allocation2 + $0x8] sm:$0x3f] %v569
    %578 = vst [vmem:[#allocation2 + $0x10] sm:$0xff] %v570
    %579 = vst [vmem:[#allocation2 + $0x18] sm:$0x3f] %v571
    %580 = vst [vmem:[#allocation2 + $0x20] sm:$0xff] %v572
    %581 = vst [vmem:[#allocation2 + $0x28] sm:$0x3f] %v573
    %582 = vst [vmem:[#allocation2 + $0x30] sm:$0xff] %v574
    %583 = vst [vmem:[#allocation2 + $0x38] sm:$0x3f] %v575
    %v584 = vld [vmem:[#allocation2] sm:$0xff]
    %v585 = vld [vmem:[#allocation2 + $0x8] sm:$0x1f]
    %v586 = vld [vmem:[#allocation2 + $0x10] sm:$0xff]
    %v587 = vld [vmem:[#allocation2 + $0x18] sm:$0x1f]
    %v588 = vld [vmem:[#allocation2 + $0x20] sm:$0xff]
    %v589 = vld [vmem:[#allocation2 + $0x28] sm:$0x1f]
    %v590 = vld [vmem:[#allocation2 + $0x30] sm:$0xff]
    %v591 = vld [vmem:[#allocation2 + $0x38] sm:$0x1f]
    %vm600 = vcmask 1044480
    %v601 = vrot.slane %v407, 3
    %v602 = vrot.slane %v410, 3
    %v603 = vsel %vm600, %v601, %v602
    %v604 = vrot.slane %v413, 3
    %v605 = vrot.slane %v416, 3
    %v606 = vsel %vm600, %v604, %v605
    %v607 = vrot.slane %v419, 3
    %v608 = vrot.slane %v422, 3
    %v609 = vsel %vm600, %v607, %v608
    %v610 = vrot.slane %v425, 3
    %v611 = vrot.slane %v428, 3
    %v612 = vsel %vm600, %v610, %v611
    %v621 = vadd.f32 %v584, %v603
    %v622 = vadd.f32 %v585, %v602
    %v623 = vadd.f32 %v586, %v606
    %v624 = vadd.f32 %v587, %v605
    %v625 = vadd.f32 %v588, %v609
    %v626 = vadd.f32 %v589, %v608
    %v627 = vadd.f32 %v590, %v612
    %v628 = vadd.f32 %v591, %v611
    %629 = vst [vmem:[#allocation2] sm:$0xff] %v621
    %630 = vst [vmem:[#allocation2 + $0x8] sm:$0x1f] %v622
    %631 = vst [vmem:[#allocation2 + $0x10] sm:$0xff] %v623
    %632 = vst [vmem:[#allocation2 + $0x18] sm:$0x1f] %v624
    %633 = vst [vmem:[#allocation2 + $0x20] sm:$0xff] %v625
    %634 = vst [vmem:[#allocation2 + $0x28] sm:$0x1f] %v626
    %635 = vst [vmem:[#allocation2 + $0x30] sm:$0xff] %v627
    %636 = vst [vmem:[#allocation2 + $0x38] sm:$0x1f] %v628
    %v637 = vld [vmem:[#allocation2] sm:$0xff]
    %v638 = vld [vmem:[#allocation2 + $0x8] sm:$0xf]
    %v639 = vld [vmem:[#allocation2 + $0x10] sm:$0xff]
    %v640 = vld [vmem:[#allocation2 + $0x18] sm:$0xf]
    %v641 = vld [vmem:[#allocation2 + $0x20] sm:$0xff]
    %v642 = vld [vmem:[#allocation2 + $0x28] sm:$0xf]
    %v643 = vld [vmem:[#allocation2 + $0x30] sm:$0xff]
    %v644 = vld [vmem:[#allocation2 + $0x38] sm:$0xf]
    %vm653 = vcmask 1043456
    %v654 = vrot.slane %v448, 4
    %v655 = vrot.slane %v451, 4
    %v656 = vsel %vm653, %v654, %v655
    %v657 = vrot.slane %v454, 4
    %v658 = vrot.slane %v457, 4
    %v659 = vsel %vm653, %v657, %v658
    %v660 = vrot.slane %v460, 4
    %v661 = vrot.slane %v463, 4
    %v662 = vsel %vm653, %v660, %v661
    %v663 = vrot.slane %v466, 4
    %v664 = vrot.slane %v469, 4
    %v665 = vsel %vm653, %v663, %v664
    %v674 = vadd.f32 %v637, %v656
    %v675 = vadd.f32 %v638, %v655
    %v676 = vadd.f32 %v639, %v659
    %v677 = vadd.f32 %v640, %v658
    %v678 = vadd.f32 %v641, %v662
    %v679 = vadd.f32 %v642, %v661
    %v680 = vadd.f32 %v643, %v665
    %v681 = vadd.f32 %v644, %v664
    %682 = vst [vmem:[#allocation2] sm:$0xff] %v674
    %683 = vst [vmem:[#allocation2 + $0x8] sm:$0xf] %v675
    %684 = vst [vmem:[#allocation2 + $0x10] sm:$0xff] %v676
    %685 = vst [vmem:[#allocation2 + $0x18] sm:$0xf] %v677
    %686 = vst [vmem:[#allocation2 + $0x20] sm:$0xff] %v678
    %687 = vst [vmem:[#allocation2 + $0x28] sm:$0xf] %v679
    %688 = vst [vmem:[#allocation2 + $0x30] sm:$0xff] %v680
    %689 = vst [vmem:[#allocation2 + $0x38] sm:$0xf] %v681
    %v690 = vld [vmem:[#allocation2] sm:$0xff]
    %v691 = vld [vmem:[#allocation2 + $0x8] sm:$0xff]
    %v692 = vld [vmem:[#allocation2 + $0x10] sm:$0xff]
    %v693 = vld [vmem:[#allocation2 + $0x18] sm:$0xff]
    %v694 = vld [vmem:[#allocation2 + $0x20] sm:$0xff]
    %v695 = vld [vmem:[#allocation2 + $0x28] sm:$0xff]
    %v696 = vld [vmem:[#allocation2 + $0x30] sm:$0xff]
    %v697 = vld [vmem:[#allocation2 + $0x38] sm:$0xff]
    %v698 = vld [vmem:[#allocation6] sm:$0xff]
    %v699 = vld [vmem:[#allocation6 + $0x8] sm:$0xff]
    %v700 = vadd.f32 %v690, %v698
    %v701 = vadd.f32 %v691, %v699
    %v702 = vadd.f32 %v692, %v698
    %v703 = vadd.f32 %v693, %v699
    %v704 = vadd.f32 %v694, %v698
    %v705 = vadd.f32 %v695, %v699
    %v706 = vadd.f32 %v696, %v698
    %v707 = vadd.f32 %v697, %v699
    %v708 = vmax.f32 %v700, %v701
    %v709 = vrot.slane %v708, 4
    %v710 = vmax.f32 %v708, %v709
    %v711 = vrot.slane %v710, 2
    %v712 = vmax.f32 %v710, %v711
    %v713 = vrot.slane %v712, 1
    %v714 = vmax.f32 %v712, %v713
    %v715 = vmax.f32 %v702, %v703
    %v716 = vrot.slane %v715, 4
    %v717 = vmax.f32 %v715, %v716
    %v718 = vrot.slane %v717, 2
    %v719 = vmax.f32 %v717, %v718
    %v720 = vrot.slane %v719, 1
    %v721 = vmax.f32 %v719, %v720
    %v722 = vmax.f32 %v704, %v705
    %v723 = vrot.slane %v722, 4
    %v724 = vmax.f32 %v722, %v723
    %v725 = vrot.slane %v724, 2
    %v726 = vmax.f32 %v724, %v725
    %v727 = vrot.slane %v726, 1
    %v728 = vmax.f32 %v726, %v727
    %v729 = vmax.f32 %v706, %v707
    %v730 = vrot.slane %v729, 4
    %v731 = vmax.f32 %v729, %v730
    %v732 = vrot.slane %v731, 2
    %v733 = vmax.f32 %v731, %v732
    %v734 = vrot.slane %v733, 1
    %v735 = vmax.f32 %v733, %v734
    %v736 = vld [vmem:[%s3] sm:$0x1]
    %v738 = vperm.slane %v736, 0
    %v740 = vadd.f32 %v714, %v738
    %v741 = vadd.f32 %v721, %v738
    %v742 = vadd.f32 %v728, %v738
    %v743 = vadd.f32 %v735, %v738
    %v744 = vmax.f32 %v740, 0.0
    %v745 = vmax.f32 %v741, 0.0
    %v746 = vmax.f32 %v742, 0.0
    %v747 = vmax.f32 %v743, 0.0
    %v748 = vld [vmem:[%s5] sm:$0xff]
    %v749 = vld [vmem:[%s5 + $0x8] sm:$0xff]
    %v750 = vld [vmem:[%s5 + $0x10] sm:$0xff]
    %v751 = vld [vmem:[%s5 + $0x18] sm:$0xff]
    %v752 = vld [vmem:[%s5 + $0x20] sm:$0xff]
    %v753 = vld [vmem:[%s5 + $0x28] sm:$0xff]
    %v754 = vld [vmem:[%s5 + $0x30] sm:$0xff]
    %v755 = vld [vmem:[%s5 + $0x38] sm:$0xff]
    %v756 = vld [vmem:[%s5 + $0x40] sm:$0xff]
    %v757 = vld [vmem:[%s5 + $0x48] sm:$0xff]
    %v758 = vld [vmem:[%s5 + $0x50] sm:$0xff]
    %v759 = vld [vmem:[%s5 + $0x58] sm:$0xff]
    %v760 = vld [vmem:[%s5 + $0x60] sm:$0xff]
    %v761 = vld [vmem:[%s5 + $0x68] sm:$0xff]
    %v762 = vld [vmem:[%s5 + $0x70] sm:$0xff]
    %v763 = vld [vmem:[%s5 + $0x78] sm:$0xff]
    %v764 = vld [vmem:[%s6] sm:$0x1]
    %v766 = vperm.slane %v764, 0
    %v772 = vrot.slane %v745, 7
    %vm773 = vcmask 1041409
    %v774 = vsel %vm773, %v772, %v744
    %v775 = vrot.slane %v746, 6
    %vm776 = vcmask 1042434
    %v777 = vsel %vm776, %v775, %v774
    %v778 = vrot.slane %v747, 5
    %vm779 = vcmask 1043459
    %v780 = vsel %vm779, %v778, %v777
    %782 = vmatpush.msra.mxu0 %v763
    %783 = vmatpush.msra.mxu0 %v762
    %784 = vmatpush.msra.mxu0 %v761
    %785 = vmatpush.msra.mxu0 %v760
    %786 = vmatpush.msra.mxu0 %v759
    %787 = vmatpush.msra.mxu0 %v758
    %788 = vmatpush.msra.mxu0 %v757
    %789 = vmatpush.msra.mxu0 %v756
    %790 = vmatpush.msra.mxu0 %v755
    %791 = vmatpush.msra.mxu0 %v754
    %792 = vmatpush.msra.mxu0 %v753
    %793 = vmatpush.msra.mxu0 %v752
    %794 = vmatpush.msra.mxu0 %v751
    %795 = vmatpush.msra.mxu0 %v750
    %796 = vmatpush.msra.mxu0 %v749
    %797 = vmatpush.msra.mxu0 %v748
    %798 = vmatmul.f32.gmra.mxu0 %v780
    %v799 = vpop.f32.mrf.mxu0
    %v800 = vadd.f32 %v766, %v799
    %801 = vdwg.mxu0
    %802 = vst [vmem:[#allocation8] sm:$0xf] %v800
    // Predicated region
    $region38: #{tpu_custom_call.1} parent=1 // pred_check
      _
    $region39: #{tpu_custom_call.1} parent=1 // pred_check_branch
      %804 = sbr.rel (0) target = $region41
    $region40: #{tpu_custom_call.1} parent=1 // pred_region
      %806 = vsyncadd [#allocation5], 0
      %s808 = sshll.u32 [#allocation8], 4
      %s809 = int_to_ptr.vmem [resolvable:$true] %s808
      %s810 = sshll.u32 %s7, 4
      %s811 = int_to_ptr.hbm [resolvable:$true] %s810
      %813 = dma.vmem_to_hbm [thread:$0]  %s809, 64, %s811, [#allocation5]
    $region41: #{tpu_custom_call.1} parent=1 // pred_fallthru
      _
    // Predicated region
    $region42: #{tpu_custom_call.1} parent=1 // pred_check
      _
    $region43: #{tpu_custom_call.1} parent=1 // pred_check_branch
      %815 = sbr.rel (0) target = $region45
    $region44: #{tpu_custom_call.1} parent=1 // pred_region
      %817 = dma.done [#allocation5], 64
    $region45: #{tpu_custom_call.1} parent=1 // pred_fallthru
      _
    %818 = vsyncpa [#allocation4], 1
    %819 = vsyncpa [#allocation7], 1
    %820 = vsyncpa [#allocation5], 1

</llo_original>
